<compile_context>
chip_gen: v7x
topology: tpu7x:2x2x1
jax: 0.10.0
libtpu: 0.0.40
codegen_flags: <defaults>
</compile_context>

<pallas_src>
import functools
import math

import jax
import jax.numpy as jnp
from jax.experimental import pallas as pl
from jax.experimental.pallas import tpu as pltpu

ARCFACE_M = 28.6
NUM_CLASSES = 16
EPS = 1e-12                       # torch.nn.functional.normalize default eps
_LANES = 128
_SUBLANES = 8
_VMEM_BUDGET = 24 * 1024 * 1024   # conservative: fits v7x (32 MiB scoped / 64 MiB phys)
_VMEM_LIMIT = 32 * 1024 * 1024    # explicit limit: raises v5e's 16 MiB scoped default
_X_BLOCK_TARGET = 4 * 1024 * 1024 # aim for multi-MiB x tiles to amortize per-step cost


def adacos_kernel(x_ref, wn_ref, labels_ref, out_ref, *, s, batch, tb):
    x = x_ref[...].astype(jnp.float32)            # (tb, F)
    w_n = wn_ref[...]                             # (C, F), already L2-normalized
    lbl = labels_ref[...]                         # (tb, 1) int32

    # L2 normalize rows of x: x / max(||x||, eps) == x * rsqrt(max(||x||^2, eps^2)).
    inv_x = jax.lax.rsqrt(
        jnp.maximum(jnp.sum(x * x, axis=-1, keepdims=True), EPS * EPS))
    x_n = x * inv_x

    # cos_theta = x_n @ w_n.T, without materializing the transpose.
    cos_theta = jax.lax.dot_general(
        x_n, w_n,
        dimension_numbers=(((1,), (1,)), ((), ())),
        preferred_element_type=jnp.float32)       # (tb, C)

    # The "+ m" margin is added to every class, so it cancels in cross-entropy.
    logits = s * cos_theta

    # Cross-entropy with integer labels; sum over this block (mean in wrapper).
    mx = jnp.max(logits, axis=-1, keepdims=True)
    lse = mx + jnp.log(jnp.sum(jnp.exp(logits - mx), axis=-1, keepdims=True))  # (tb,1)
    cls_idx = jax.lax.broadcasted_iota(jnp.int32, logits.shape, 1)             # (tb,C)
    onehot = (cls_idx == lbl).astype(jnp.float32)
    target = jnp.sum(logits * onehot, axis=-1, keepdims=True)                  # (tb,1)
    per_example = lse - target                                                 # (tb,1)

    # Mask out batch-padding rows (global row index >= true batch size).
    row_idx = (pl.program_id(0) * tb
               + jax.lax.broadcasted_iota(jnp.int32, per_example.shape, 0))
    per_example = jnp.where(row_idx < batch, per_example, 0.0)

    block_sum = jnp.sum(per_example, axis=0, keepdims=True)                    # (1,1)
    out_ref[...] = jnp.broadcast_to(block_sum[None], out_ref.shape)


def _choose_tile(B, F, C):
    """Pick (tb, nb, Bp): row-block size (mult of 8), #blocks, padded batch."""
    # Per-row VMEM cost:
    #   x block        : double-buffered f32 (tb, F)
    #   labels block   : (tb, 1) int32 pads to 128 lanes in VMEM, double-buffered
    #   f32 temporaries: x_n (F), cos/logits/exp/onehot (~4C), per-example etc.
    per_row = 2 * F * 4 + 2 * _LANES * 4 + (2 * F + 4 * C + 8) * 4
    fixed = 2 * C * F * 4 + 2 * _SUBLANES * _LANES * 4       # w_n + output block
    tb_cap = max(_SUBLANES, (_VMEM_BUDGET - fixed) // per_row)
    # Target ~4 MiB of x per block so the DMA dwarfs the ~0.35 us per-step cost.
    tb_target = max(_SUBLANES, _X_BLOCK_TARGET // (F * 4))
    tb = min(tb_cap, tb_target)

    Bp8 = ((B + _SUBLANES - 1) // _SUBLANES) * _SUBLANES     # pad B to mult of 8
    # >= 2 blocks when the batch allows it: lets the "parallel" grid axis
    # shard across both TensorCores on v7x.
    if Bp8 >= 2 * _SUBLANES:
        tb = min(tb, max(_SUBLANES, (Bp8 // 2) // _SUBLANES * _SUBLANES))
    tb = min(tb, Bp8)
    tb = max(_SUBLANES, (tb // _SUBLANES) * _SUBLANES)
    nb = (Bp8 + tb - 1) // tb
    return tb, nb, nb * tb


def adacos_loss(x, W, labels, *, num_classes=NUM_CLASSES, m=ARCFACE_M):
    """x: (B, F) f32, W: (C, F) f32, labels: (B,) int -> scalar f32 mean CE loss."""
    B, F = x.shape
    C, Fw = W.shape
    assert F == Fw and C == num_classes
    s = math.sqrt(2.0) * math.log(num_classes - 1)

    # Hoist the (tiny) W normalization out of the kernel: done once here,
    # instead of being redone on every grid step.
    w_n = (W / jnp.maximum(jnp.linalg.norm(W, axis=-1, keepdims=True), EPS)
           ).astype(jnp.float32)

    tb, nb, Bp = _choose_tile(B, F, C)
    x_p = x.astype(jnp.float32)
    lbl_p = labels.astype(jnp.int32)
    if Bp != B:
        x_p = jnp.pad(x_p, ((0, Bp - B), (0, 0)))
        lbl_p = jnp.pad(lbl_p, (0, Bp - B))
    labels2d = lbl_p.reshape(Bp, 1)

    kernel = functools.partial(adacos_kernel, s=float(s), batch=B, tb=tb)

    partial_sums = pl.pallas_call(
        kernel,
        out_shape=jax.ShapeDtypeStruct((nb, _SUBLANES, _LANES), jnp.float32),
        grid=(nb,),
        in_specs=[
            pl.BlockSpec((tb, F), lambda i: (i, 0)),   # x rows for this block
            pl.BlockSpec((C, F), lambda i: (0, 0)),    # full, pre-normalized W
            pl.BlockSpec((tb, 1), lambda i: (i, 0)),   # labels for this block
        ],
        out_specs=pl.BlockSpec((1, _SUBLANES, _LANES), lambda i: (i, 0, 0)),
        compiler_params=pltpu.CompilerParams(
            dimension_semantics=("parallel",),
            vmem_limit_bytes=_VMEM_LIMIT),
    )(x_p, w_n, labels2d)

    return jnp.sum(partial_sums[:, 0, 0]) / B


if __name__ == "__main__":
    # Small shapes consistent with the module: B=8 samples, 32 features, 16 classes.
    B, num_features, num_classes = 8, 32, NUM_CLASSES

    key = jax.random.PRNGKey(0)
    k_x, k_w, k_lbl = jax.random.split(key, 3)

    x = jax.random.normal(k_x, (B, num_features), dtype=jnp.float32)
    labels = jax.random.randint(k_lbl, (B,), 0, num_classes, dtype=jnp.int32)

    # Deterministic xavier_normal_ init of W: std = sqrt(2 / (fan_in + fan_out)).
    xavier_std = math.sqrt(2.0 / (num_classes + num_features))
    W = xavier_std * jax.random.normal(k_w, (num_classes, num_features),
                                       dtype=jnp.float32)

    loss = adacos_loss(x, W, labels)
    jax.block_until_ready(loss)

    # Pure-JAX reference check (same math as the PyTorch module, margin included).
    s = math.sqrt(2.0) * math.log(num_classes - 1)
    xn = x / jnp.maximum(jnp.linalg.norm(x, axis=-1, keepdims=True), EPS)
    wn = W / jnp.maximum(jnp.linalg.norm(W, axis=-1, keepdims=True), EPS)
    ref_logits = s * (xn @ wn.T + ARCFACE_M)
    ref_lse = jax.scipy.special.logsumexp(ref_logits, axis=-1)
    ref_loss = jnp.mean(ref_lse - ref_logits[jnp.arange(B), labels])
    assert jnp.allclose(loss, ref_loss, rtol=1e-4, atol=1e-4), (loss, ref_loss)

    print("KERNEL_OK")
</pallas_src>

<mosaic_0001>
module attributes {stable_mosaic.version = 11 : i64} {
  func.func @adacos_kernel(%arg0: i32, %arg1: memref<8x32xf32, #tpu.memory_space<vmem>>, %arg2: memref<16x32xf32, #tpu.memory_space<vmem>>, %arg3: memref<8x1xi32, #tpu.memory_space<vmem>>, %arg4: memref<1x8x128xf32, #tpu.memory_space<vmem>>) attributes {dimension_semantics = [#tpu.dimension_semantics<parallel>], iteration_bounds = array<i64: 1>, scalar_prefetch = 0 : i64, scratch_operands = 0 : i64, tpu.core_type = #tpu.core_type<tc>, window_params = [{transform_indices = @transform_0, window_bounds = array<i64: 8, 32>}, {pipeline_mode = #tpu.pipeline_mode<synchronous>, transform_indices = @transform_1, window_bounds = array<i64: 16, 32>}, {transform_indices = @transform_2, window_bounds = array<i64: 8, 1>}, {transform_indices = @transform_3, window_bounds = array<i64: 1, 8, 128>}]} {
    %c0 = arith.constant 0 : index
    %c0_0 = arith.constant 0 : index
    %0 = vector.load %arg1[%c0, %c0_0] : memref<8x32xf32, #tpu.memory_space<vmem>>, vector<8x32xf32>
    %c0_1 = arith.constant 0 : index
    %c0_2 = arith.constant 0 : index
    %1 = vector.load %arg2[%c0_1, %c0_2] : memref<16x32xf32, #tpu.memory_space<vmem>>, vector<16x32xf32>
    %c0_3 = arith.constant 0 : index
    %c0_4 = arith.constant 0 : index
    %2 = vector.load %arg3[%c0_3, %c0_4] : memref<8x1xi32, #tpu.memory_space<vmem>>, vector<8x1xi32>
    %3 = arith.mulf %0, %0 : vector<8x32xf32>
    %cst = arith.constant dense<0.000000e+00> : vector<8xf32>
    %4 = vector.multi_reduction <add>, %3, %cst [1] : vector<8x32xf32> to vector<8xf32>
    %5 = vector.shape_cast %4 : vector<8xf32> to vector<8x1xf32>
    %cst_5 = arith.constant 1.000000e-24 : f32
    %6 = vector.broadcast %cst_5 : f32 to vector<8x1xf32>
    %7 = arith.maximumf %5, %6 : vector<8x1xf32>
    %8 = math.rsqrt %7 : vector<8x1xf32>
    %9 = vector.broadcast %8 : vector<8x1xf32> to vector<8x32xf32>
    %10 = arith.mulf %0, %9 : vector<8x32xf32>
    %cst_6 = arith.constant dense<0.000000e+00> : vector<8x16xf32>
    %11 = tpu.matmul %10, %1, %cst_6 {dimension_numbers = #tpu.dot_dimension_numbers<[1], [1], [0], [0], [0, 0, 1, 0], [], []>} : vector<8x32xf32>, vector<16x32xf32>, vector<8x16xf32> -> vector<8x16xf32>
    %cst_7 = arith.constant 3.82976127 : f32
    %12 = vector.broadcast %cst_7 : f32 to vector<8x16xf32>
    %13 = arith.mulf %12, %11 : vector<8x16xf32>
    %cst_8 = arith.constant dense<0xFF800000> : vector<8xf32>
    %14 = vector.multi_reduction <maximumf>, %13, %cst_8 [1] : vector<8x16xf32> to vector<8xf32>
    %15 = vector.shape_cast %14 : vector<8xf32> to vector<8x1xf32>
    %16 = vector.broadcast %15 : vector<8x1xf32> to vector<8x16xf32>
    %17 = arith.subf %13, %16 : vector<8x16xf32>
    %18 = math.exp %17 : vector<8x16xf32>
    %cst_9 = arith.constant dense<0.000000e+00> : vector<8xf32>
    %19 = vector.multi_reduction <add>, %18, %cst_9 [1] : vector<8x16xf32> to vector<8xf32>
    %20 = vector.shape_cast %19 : vector<8xf32> to vector<8x1xf32>
    %21 = math.log %20 : vector<8x1xf32>
    %22 = arith.addf %15, %21 : vector<8x1xf32>
    %23 = tpu.iota {dimensions = array<i32: 1>} : vector<8x16xi32>
    %24 = vector.broadcast %2 : vector<8x1xi32> to vector<8x16xi32>
    %25 = arith.cmpi eq, %23, %24 : vector<8x16xi32>
    %26 = arith.extui %25 : vector<8x16xi1> to vector<8x16xi32>
    %27 = arith.sitofp %26 : vector<8x16xi32> to vector<8x16xf32>
    %28 = arith.mulf %13, %27 : vector<8x16xf32>
    %cst_10 = arith.constant dense<0.000000e+00> : vector<8xf32>
    %29 = vector.multi_reduction <add>, %28, %cst_10 [1] : vector<8x16xf32> to vector<8xf32>
    %30 = vector.shape_cast %29 : vector<8xf32> to vector<8x1xf32>
    %31 = arith.subf %22, %30 : vector<8x1xf32>
    %c8_i32 = arith.constant 8 : i32
    %32 = arith.muli %arg0, %c8_i32 : i32
    %33 = tpu.iota {dimensions = array<i32: 0>} : vector<8x1xi32>
    %34 = vector.broadcast %32 : i32 to vector<8x1xi32>
    %35 = arith.addi %34, %33 : vector<8x1xi32>
    %c8_i32_11 = arith.constant 8 : i32
    %36 = vector.broadcast %c8_i32_11 : i32 to vector<8x1xi32>
    %37 = arith.cmpi slt, %35, %36 : vector<8x1xi32>
    %cst_12 = arith.constant 0.000000e+00 : f32
    %38 = vector.broadcast %cst_12 : f32 to vector<8x1xf32>
    %39 = arith.select %37, %31, %38 : vector<8x1xi1>, vector<8x1xf32>
    %cst_13 = arith.constant dense<0.000000e+00> : vector<1xf32>
    %40 = vector.multi_reduction <add>, %39, %cst_13 [0] : vector<8x1xf32> to vector<1xf32>
    %41 = vector.shape_cast %40 : vector<1xf32> to vector<1x1xf32>
    %42 = vector.shape_cast %41 : vector<1x1xf32> to vector<1x1x1xf32>
    %43 = vector.shape_cast %42 : vector<1x1x1xf32> to vector<1x1x1xf32>
    %44 = vector.broadcast %43 : vector<1x1x1xf32> to vector<1x8x128xf32>
    %c0_14 = arith.constant 0 : index
    %c0_15 = arith.constant 0 : index
    %c0_16 = arith.constant 0 : index
    %45 = vector.load %arg4[%c0_14, %c0_15, %c0_16] : memref<1x8x128xf32, #tpu.memory_space<vmem>>, vector<1x8x128xf32>
    tpu.vector_store %arg4[%c0_14, %c0_15, %c0_16], %44 {strides = array<i32>} : memref<1x8x128xf32, #tpu.memory_space<vmem>>, vector<1x8x128xf32>,
    return
  }
  func.func @transform_0(%arg0: i32) -> (i32, i32) {
    %c0_i32 = arith.constant 0 : i32
    %c0_i32_0 = arith.constant 0 : i32
    return %arg0, %c0_i32 : i32, i32
  }
  func.func @transform_1(%arg0: i32) -> (i32, i32) {
    %c0_i32 = arith.constant 0 : i32
    %c0_i32_0 = arith.constant 0 : i32
    %c0_i32_1 = arith.constant 0 : i32
    return %c0_i32, %c0_i32_0 : i32, i32
  }
  func.func @transform_2(%arg0: i32) -> (i32, i32) {
    %c0_i32 = arith.constant 0 : i32
    %c0_i32_0 = arith.constant 0 : i32
    return %arg0, %c0_i32 : i32, i32
  }
  func.func @transform_3(%arg0: i32) -> (i32, i32, i32) {
    %c0_i32 = arith.constant 0 : i32
    %c0_i32_0 = arith.constant 0 : i32
    %c0_i32_1 = arith.constant 0 : i32
    return %arg0, %c0_i32, %c0_i32_0 : i32, i32, i32
  }
}

</mosaic_0001>

<llo_original>
// kernel: tpu_custom_call.1
$region0: #{tpu_custom_call.1}
  #allocation0 [shape = 'u32[]', space=smem, size = 0x4, offset = 0x4, fixed_abs, tag = 'smem constant byte address 0x4 - core index']
  #allocation1 [shape = 'u32[144,128]{1,0:T(1,128)}', space=vmem, size = 0x12000, scoped, tag = 'internal scratch']
  %s0 = inlined_call_operand.vmem [shape: f32[8,32], index: 0, kind: input, shape index: {}]
  %s1 = inlined_call_operand.hbm [shape: f32[16,32], index: 1, kind: input, shape index: {}]
  %s2 = inlined_call_operand.vmem [shape: s32[8,1], index: 2, kind: input, shape index: {}]
  %s3 = inlined_call_operand.hbm [shape: f32[1,8,128], index: 3, kind: output, shape index: {}]
  %s4 = sld [smem:[#allocation0]]
  $region26: #{tpu_custom_call.1} parent=0
    _
  %s6 = ssub.s32 1, %s4
  %s7 = scalar_select 0, %s6, %s4
  $region1: #{tpu_custom_call.1} parent=0
    #allocation2 [shape = 'u8[8192]{0}', space=vmem, size = 0x2000, scoped, tag = 'input window, operand 1, single buffered']
    #allocation3 [shape = 's32[1]{0}', space=sflag, size = 0x4, scoped, tag = 'scoped memory for tpu_custom_call.1']
    #allocation4 [shape = 's32[1]{0}', space=sflag, size = 0x4, scoped, tag = 'scoped memory for tpu_custom_call.1']
    #allocation5 [shape = 'u8[4096]{0}', space=vmem, size = 0x1000, scoped, tag = 'output window, operand 0, single buffered']
    %8 = vsyncpa [#allocation3], 0
    %9 = vsyncpa [#allocation4], 0
    // Predicated region
    $region2: #{tpu_custom_call.1} parent=1 // pred_check
      _
    $region3: #{tpu_custom_call.1} parent=1 // pred_check_branch
      %11 = sbr.rel (0) target = $region5
    $region4: #{tpu_custom_call.1} parent=1 // pred_region
      _
    $region5: #{tpu_custom_call.1} parent=1 // pred_fallthru
      _
    // Predicated region
    $region6: #{tpu_custom_call.1} parent=1 // pred_check
      _
    $region7: #{tpu_custom_call.1} parent=1 // pred_check_branch
      %13 = sbr.rel (0) target = $region9
    $region8: #{tpu_custom_call.1} parent=1 // pred_region
      %s15 = ssub.s32 256, 256
      %16 = vsyncadd [#allocation3], %s15
      %s17 = sshll.u32 [#allocation2], 4
      %s18 = int_to_ptr.vmem [resolvable:$true] %s17
      %23 = dma.hbm_to_vmem [thread:$0]  %s1, 256, %s18, [#allocation3], 128, 128, 8
    $region9: #{tpu_custom_call.1} parent=1 // pred_fallthru
      _
    // Predicated region
    $region10: #{tpu_custom_call.1} parent=1 // pred_check
      _
    $region11: #{tpu_custom_call.1} parent=1 // pred_check_branch
      %25 = sbr.rel (0) target = $region13
    $region12: #{tpu_custom_call.1} parent=1 // pred_region
      _
    $region13: #{tpu_custom_call.1} parent=1 // pred_fallthru
      _
    // Predicated region
    $region14: #{tpu_custom_call.1} parent=1 // pred_check
      _
    $region15: #{tpu_custom_call.1} parent=1 // pred_check_branch
      %27 = sbr.rel (0) target = $region17
    $region16: #{tpu_custom_call.1} parent=1 // pred_region
      %28 = dma.done [#allocation3], 256
    $region17: #{tpu_custom_call.1} parent=1 // pred_fallthru
      _
    %v29 = vld [vmem:[%s0] sm:$0xff]
    %v30 = vld [vmem:[#allocation2] sm:$0xff]
    %v31 = vld [vmem:[#allocation2 + $0x8] sm:$0xff]
    %v32 = vld [vmem:[%s2] sm:$0xff]
    %v33 = vmul.f32 %v29, %v29
    %vm34 = vcmask 261120
    %v35 = vsel %vm34, %v33, 0.0
    %36 = vadd.xlane.f32.xlu0 %v35
    %v37 = vpop.xlane.xlu0 %36
    %v38 = vmax.f32 %v37, 1e-24
    %v39 = vrsqrt.pop %v38
    %v40 = vmul.f32 %v29, %v39
    %v42 = vsel %vm34, %v40, 0
    %v45 = vsel %vm34, %v30, 0
    %v48 = vsel %vm34, %v31, 0
    %50 = vmatprep.subr.mxu0 0.0
    %51 = vmatpush1.xpose.msra.mxu0 %v45
    %52 = vmatprep.subr.mxu0 0.0
    %53 = vmatpush1.xpose.msra.mxu0 %v48
    %54 = vmatprep.subr.mxu0 0.0
    %55 = vmatpush1.xpose.msra.mxu0 0.0
    %56 = vmatprep.subr.mxu0 0.0
    %57 = vmatpush1.xpose.msra.mxu0 0.0
    %58 = vmatprep.subr.mxu0 0.0
    %59 = vmatpush1.xpose.msra.mxu0 0.0
    %60 = vmatprep.subr.mxu0 0.0
    %61 = vmatpush1.xpose.msra.mxu0 0.0
    %62 = vmatprep.subr.mxu0 0.0
    %63 = vmatpush1.xpose.msra.mxu0 0.0
    %64 = vmatprep.subr.mxu0 0.0
    %65 = vmatpush1.xpose.msra.mxu0 0.0
    %66 = vmatprep.subr.mxu0 0.0
    %67 = vmatpush1.xpose.msra.mxu0 0.0
    %68 = vmatprep.subr.mxu0 0.0
    %69 = vmatpush1.xpose.msra.mxu0 0.0
    %70 = vmatprep.subr.mxu0 0.0
    %71 = vmatpush1.xpose.msra.mxu0 0.0
    %72 = vmatprep.subr.mxu0 0.0
    %73 = vmatpush1.xpose.msra.mxu0 0.0
    %74 = vmatprep.subr.mxu0 0.0
    %75 = vmatpush1.xpose.msra.mxu0 0.0
    %76 = vmatprep.subr.mxu0 0.0
    %77 = vmatpush1.xpose.msra.mxu0 0.0
    %78 = vmatprep.subr.mxu0 0.0
    %79 = vmatpush1.xpose.msra.mxu0 0.0
    %80 = vmatprep.subr.mxu0 0.0
    %81 = vmatpush1.xpose.msra.mxu0 0.0
    %82 = vmatprep.subr.mxu0 0.0
    %83 = vmatpush1.xpose.msra.mxu0 0.0
    %84 = vmatprep.subr.mxu0 0.0
    %85 = vmatpush1.xpose.msra.mxu0 0.0
    %86 = vmatprep.subr.mxu0 0.0
    %87 = vmatpush1.xpose.msra.mxu0 0.0
    %88 = vmatprep.subr.mxu0 0.0
    %89 = vmatpush1.xpose.msra.mxu0 0.0
    %90 = vmatprep.subr.mxu0 0.0
    %91 = vmatpush1.xpose.msra.mxu0 0.0
    %92 = vmatprep.subr.mxu0 0.0
    %93 = vmatpush1.xpose.msra.mxu0 0.0
    %94 = vmatprep.subr.mxu0 0.0
    %95 = vmatpush1.xpose.msra.mxu0 0.0
    %96 = vmatprep.subr.mxu0 0.0
    %97 = vmatpush1.xpose.msra.mxu0 0.0
    %98 = vmatprep.subr.mxu0 0.0
    %99 = vmatpush1.xpose.msra.mxu0 0.0
    %100 = vmatprep.subr.mxu0 0.0
    %101 = vmatpush1.xpose.msra.mxu0 0.0
    %102 = vmatprep.subr.mxu0 0.0
    %103 = vmatpush1.xpose.msra.mxu0 0.0
    %104 = vmatprep.subr.mxu0 0.0
    %105 = vmatpush1.xpose.msra.mxu0 0.0
    %106 = vmatprep.subr.mxu0 0.0
    %107 = vmatpush1.xpose.msra.mxu0 0.0
    %108 = vmatprep.subr.mxu0 0.0
    %109 = vmatpush1.xpose.msra.mxu0 0.0
    %110 = vmatprep.subr.mxu0 0.0
    %111 = vmatpush1.xpose.msra.mxu0 0.0
    %112 = vmatprep.subr.mxu0 0.0
    %113 = vmatpush1.xpose.msra.mxu0 0.0
    %114 = vmatprep.mubr.f32.mxu0 0.0
    %115 = vmatmul.mubr.f32.gmra.mrb[0].mxu0 %v42
    %v116 = vpop.f32.mrb[0].mxu0
    %v117 = vadd.f32 0.0, %v116
    %v118 = vpop.f32.mrb[0].mxu0
    %119 = vdwg.mxu0
    %v120 = vmul.f32 %v117, 3.8297613
    %vm121 = vcmask 130048
    %v122 = vsel %vm121, %v120, -inf
    %123 = vmax.xlane.f32.xlu0 %v122
    %v124 = vpop.xlane.xlu0 %123
    %v125 = vsub.f32 %v120, %v124
    %v126 = vmul.f32 %v125, 1.442695
    %v127 = vpow.pop %v126
    %v128 = vsel %vm121, %v127, 0.0
    %129 = vadd.xlane.f32.xlu0 %v128
    %v130 = vpop.xlane.xlu0 %129
    %v131 = vlog2.pop %v130
    %v132 = vmul.f32 %v131, 0.6931472
    %v133 = vadd.f32 %v124, %v132
    %v134 = vlaneseq
    %v135 = vand.u32 %v134, 127
    %136 = vset.pattern.permute.xlu0 0
    %137 = vperm.xlu0 %136, %v32
    %v138 = vpop.permute.xlu0 %137
    %vm139 = vcmp.eq.s32.totalorder %v135, %v138
    %v140 = vsel %vm139, 1, 0
    %v141 = vcvt.s32.f32 %v140
    %v142 = vmul.f32 %v120, %v141
    %v143 = vsel %vm121, %v142, 0.0
    %144 = vadd.xlane.f32.xlu0 %v143
    %v145 = vpop.xlane.xlu0 %144
    %v146 = vsub.f32 %v133, %v145
    %s147 = smul.u32 0, 8
    %v148 = vlaneseq
    %v149 = vshrl.u32 %v148, 7
    %v150 = vstv %s147
    %v151 = vadd.s32 %v150, %v149
    %vm152 = vcmp.lt.s32.totalorder %v151, 8
    %v153 = vsel %vm152, %v146, 0.0
    %v154 = vrot.slane %v153, 4
    %v155 = vadd.f32 %v153, %v154
    %v156 = vrot.slane %v155, 2
    %v157 = vadd.f32 %v155, %v156
    %v158 = vrot.slane %v157, 1
    %v159 = vadd.f32 %v157, %v158
    %160 = vst [vmem:[#allocation5] sm:$0xff] %v159
    // Predicated region
    $region18: #{tpu_custom_call.1} parent=1 // pred_check
      _
    $region19: #{tpu_custom_call.1} parent=1 // pred_check_branch
      %162 = sbr.rel (0) target = $region21
    $region20: #{tpu_custom_call.1} parent=1 // pred_region
      %s164 = ssub.s32 128, 128
      %165 = vsyncadd [#allocation4], %s164
      %s167 = sshll.u32 [#allocation5], 4
      %s168 = int_to_ptr.vmem [resolvable:$true] %s167
      %170 = dma.vmem_to_hbm [thread:$0]  %s168, 128, %s3, [#allocation4]
    $region21: #{tpu_custom_call.1} parent=1 // pred_fallthru
      _
    // Predicated region
    $region22: #{tpu_custom_call.1} parent=1 // pred_check
      _
    $region23: #{tpu_custom_call.1} parent=1 // pred_check_branch
      %172 = sbr.rel (0) target = $region25
    $region24: #{tpu_custom_call.1} parent=1 // pred_region
      %173 = dma.done [#allocation4], 128
    $region25: #{tpu_custom_call.1} parent=1 // pred_fallthru
      _
    %174 = vsyncpa [#allocation3], 1
    %175 = vsyncpa [#allocation4], 1

</llo_original>
